<compile_context>
chip_gen: v7x
topology: tpu7x:2x2x1
jax: 0.10.0
libtpu: 0.0.40
codegen_flags: <defaults>
</compile_context>

<pallas_src>
import functools

import jax
import jax.numpy as jnp
from jax.experimental import pallas as pl
from jax.experimental.pallas import tpu as pltpu


_LANE = 128   # lane width / MXU dimension
_SUB = 16     # sublane alignment for bf16 second-minor dims


def _round_up(x: int, m: int) -> int:
    return ((x + m - 1) // m) * m


def _vmem_capacity_bytes() -> int:
    """Physical per-core VMEM (128 MiB on v5e/v6e, 64 MiB on v7x)."""
    try:
        cap = getattr(pltpu.get_tpu_info(), "vmem_capacity_bytes", None)
        if cap:
            return int(cap)
    except Exception:
        pass
    return 64 << 20     # conservative (v7x-sized) fallback


def _abc_kernel(x_ref, a1_ref, a2_ref, b1_ref, b2_ref, o_ref, *scratch,
                scale1, scale2, bias_tune, activation,
                k_steps, acc_in_out, mxu_dtype):
    """Grid = (batch tiles, variable_width tiles, input_width tiles).

    K (input_width) is the innermost reduction feeding the hidden accumulator;
    V (variable_width) is the outer reduction feeding the output accumulator.
    """
    v = pl.program_id(1)
    k = pl.program_id(2)

    s = list(scratch)
    hid_acc = s.pop(0) if k_steps > 1 else None
    out_acc = o_ref if acc_in_out else s.pop(0)

    @pl.when((v == 0) & (k == 0))
    def _init_out():
        out_acc[...] = jnp.zeros_like(out_acc)

    # Partial first projection for this K chunk (MXU, bf16-in / f32-accumulate).
    partial = jnp.dot(x_ref[...].astype(mxu_dtype), a1_ref[...],
                      preferred_element_type=jnp.float32)

    if k_steps > 1:
        @pl.when(k == 0)
        def _init_hid():
            hid_acc[...] = jnp.zeros_like(hid_acc)
        hid_acc[...] += partial

    @pl.when(k == k_steps - 1)
    def _hidden_and_second_matmul():
        hidden = hid_acc[...] if k_steps > 1 else partial
        hidden = hidden * scale1 + b1_ref[...] * bias_tune      # (bt,vt)+(1,vt)
        if activation == "relu":
            hidden = jnp.maximum(hidden, 0.0)
        elif activation == "tanh":
            hidden = jnp.tanh(hidden)
        # "identity": no-op.  ("custom" is rejected in the wrapper.)
        out_acc[...] += jnp.dot(hidden.astype(mxu_dtype), a2_ref[...],
                                preferred_element_type=jnp.float32)

    @pl.when((v == pl.num_programs(1) - 1) & (k == k_steps - 1))
    def _finalize():
        o_ref[...] = (out_acc[...] * scale2
                      + b2_ref[...] * bias_tune).astype(o_ref.dtype)


def abc_core_stack_forward(x, A_1, A_2, bias_1, bias_2, *,
                           list_a, bias_tune, activation="relu",
                           batch_tile=None, v_tile=None, k_tile=None,
                           compute_dtype=jnp.bfloat16):
    """Fused forward of abc_CoreStack.  x: (B, input_width)."""
    if activation not in ("relu", "tanh", "identity"):
        # TODO(synk): 'custom' activation callbacks cannot be lowered statically.
        raise ValueError(f"unsupported hidden_layer_activation: {activation!r}")

    B, input_width = x.shape
    variable_width = A_1.shape[1]
    output_width = A_2.shape[1]
    out_dtype = x.dtype
    acc_in_out = jnp.dtype(out_dtype) == jnp.dtype(jnp.float32)

    # abc forward scaling uses the *logical* (unpadded) widths.
    scale1 = float(input_width) ** (-float(list_a[0]))
    scale2 = float(variable_width) ** (-float(list_a[1]))
    bias_tune = float(bias_tune)

    # ---------------- generation-aware VMEM budget ----------------
    capacity = _vmem_capacity_bytes()
    # Reserve headroom for Mosaic internal scratch / semaphores / metadata:
    # ~51 MiB usable on v7x (64 MiB), ~102 MiB usable on v5e/v6e (128 MiB).
    budget = capacity - max(12 << 20, capacity // 5)
    big_vmem = budget >= (80 << 20)

    # ---------------- padded geometry ----------------
    in_pad0 = _round_up(input_width, _LANE)
    v_pad0 = _round_up(variable_width, _LANE)
    out_pad = _round_up(output_width, _LANE)

    w_item = jnp.dtype(compute_dtype).itemsize
    out_item = jnp.dtype(out_dtype).itemsize
    # Pessimistic: x may be consumed natively (e.g. f32) with an in-kernel cast.
    x_item = max(jnp.dtype(x.dtype).itemsize, w_item)

    # ---------------- tile selection ----------------
    if batch_tile is None:
        # Big tiles, but keep >=2 batch steps when B allows it so the
        # "parallel" axis can shard across v7x's two TensorCores.
        target = 1024 if big_vmem else 512
        batch_tile = min(target, max(_SUB, _round_up(pl.cdiv(B, 2), _SUB)))
    batch_tile = max(_SUB, _round_up(min(batch_tile, _round_up(B, _SUB)), _SUB))

    if v_tile is None:
        # 128 MiB chips (v5e/v6e): prefer a single V step -> no accumulator
        # RMW traffic; 64 MiB chips (v7x): bound resident weight footprint.
        v_tile = v_pad0 if big_vmem else min(v_pad0, 1024)
    v_tile = max(_LANE, min(_round_up(v_tile, _LANE), v_pad0))

    if k_tile is None:
        k_tile = in_pad0            # no K tiling unless VMEM forces it
    k_tile = max(_LANE, min(_round_up(k_tile, _LANE), in_pad0))

    def _usage(bt, vt, kt, nk):
        # Pessimistic (everything double-buffered) so that both the
        # Buffered(1) build and its default-pipelining fallback always fit.
        use = 2 * bt * kt * x_item                    # x blocks
        use += 2 * kt * vt * w_item                   # A_1 blocks
        use += 2 * vt * out_pad * w_item              # A_2 blocks
        use += 2 * vt * 4 + 2 * out_pad * 4           # bias rows (f32)
        use += 2 * bt * out_pad * out_item            # output blocks
        if nk > 1:
            use += bt * vt * 4                        # f32 hidden accumulator
        if not acc_in_out:
            use += bt * out_pad * 4                   # f32 output accumulator
        return use

    while True:
        in_pad = _round_up(in_pad0, k_tile)
        v_pad = _round_up(v_pad0, v_tile)
        b_pad = _round_up(B, batch_tile)
        num_b = b_pad // batch_tile
        num_v = v_pad // v_tile
        num_k = in_pad // k_tile
        if _usage(batch_tile, v_tile, k_tile, num_k) <= budget:
            break
        # Halve the larger of the K / V tiles (keeps MXU-friendly M/N tiles
        # balanced); shrink the batch tile only as a last resort.
        if k_tile >= v_tile and k_tile > _LANE:
            k_tile = _round_up(k_tile // 2, _LANE)
        elif v_tile > _LANE:
            v_tile = _round_up(v_tile // 2, _LANE)
        elif k_tile > _LANE:
            k_tile = _round_up(k_tile // 2, _LANE)
        elif batch_tile > _SUB:
            batch_tile = _round_up(batch_tile // 2, _SUB)
        else:
            break       # minimum tiles; let the compiler have the final word

    # ---------------- operand staging ----------------
    # Zero padding is exact: padded K columns multiply zero A_1 rows, padded
    # hidden columns are act(0*scale + 0) = 0 against zero A_2 rows, and
    # padded batch rows / output columns are sliced off.
    def pad2(a, rows, cols, dtype):
        a = a.astype(dtype)
        r, c = a.shape
        if (r, c) == (rows, cols):
            return a
        return jnp.pad(a, ((0, rows - r), (0, cols - c)))

    # Weights/biases are re-read num_b times -> pre-cast once in the wrapper.
    a1_c = pad2(A_1, in_pad, v_pad, compute_dtype)
    a2_c = pad2(A_2, v_pad, out_pad, compute_dtype)
    b1_c = pad2(bias_1.reshape(1, -1), 1, v_pad, jnp.float32)
    b2_c = pad2(bias_2.reshape(1, -1), 1, out_pad, jnp.float32)

    # Activations: skip the wrapper-side pad/cast HBM round trip whenever the
    # logical shape is already tile-aligned; cast to bf16 inside the kernel.
    if b_pad == B and in_pad == input_width:
        x_c = x
    else:
        x_c = pad2(x, b_pad, in_pad, compute_dtype)

    # ---------------- cost / VMEM bookkeeping ----------------
    flops = 2.0 * B * (input_width * variable_width
                       + variable_width * output_width)
    transc = float(B * variable_width) if activation == "tanh" else 0.0
    # x is re-fetched once per V tile; the weights/bias_1 once per batch tile.
    bytes_accessed = int(
        num_v * b_pad * in_pad * jnp.dtype(x_c.dtype).itemsize
        + num_b * (in_pad * v_pad + v_pad * out_pad) * w_item
        + num_b * v_pad * 4 + out_pad * 4
        + b_pad * out_pad * out_item)
    cost = pl.CostEstimate(flops=int(flops), transcendentals=int(transc),
                           bytes_accessed=bytes_accessed)

    usage = _usage(batch_tile, v_tile, k_tile, num_k)
    vmem_limit = int(min(budget, max(usage + (8 << 20), 32 << 20)))

    kernel = functools.partial(
        _abc_kernel, scale1=scale1, scale2=scale2, bias_tune=bias_tune,
        activation=activation, k_steps=num_k, acc_in_out=acc_in_out,
        mxu_dtype=jnp.dtype(compute_dtype))

    scratch_shapes = []
    if num_k > 1:
        scratch_shapes.append(pltpu.VMEM((batch_tile, v_tile), jnp.float32))
    if not acc_in_out:
        scratch_shapes.append(pltpu.VMEM((batch_tile, out_pad), jnp.float32))

    def build(single_buffer_invariants):
        def mode(invariant):
            if single_buffer_invariants and invariant:
                return {"pipeline_mode": pl.Buffered(1)}
            return {}

        grid_spec = pltpu.PrefetchScalarGridSpec(
            num_scalar_prefetch=0,
            grid=(num_b, num_v, num_k),          # reductions (V, K) innermost
            in_specs=[
                pl.BlockSpec((batch_tile, k_tile), lambda i, v, k: (i, k),
                             **mode(num_b == 1 and num_k == 1)),
                pl.BlockSpec((k_tile, v_tile), lambda i, v, k: (k, v),
                             **mode(num_v == 1 and num_k == 1)),
                pl.BlockSpec((v_tile, out_pad), lambda i, v, k: (v, 0),
                             **mode(num_v == 1)),
                pl.BlockSpec((1, v_tile), lambda i, v, k: (0, v),
                             **mode(num_v == 1)),
                pl.BlockSpec((1, out_pad), lambda i, v, k: (0, 0),
                             **mode(True)),
            ],
            out_specs=pl.BlockSpec((batch_tile, out_pad),
                                   lambda i, v, k: (i, 0)),
            scratch_shapes=scratch_shapes,
        )
        return pl.pallas_call(
            kernel,
            out_shape=jax.ShapeDtypeStruct((b_pad, out_pad), out_dtype),
            grid_spec=grid_spec,
            compiler_params=pltpu.CompilerParams(
                dimension_semantics=("parallel", "arbitrary", "arbitrary"),
                vmem_limit_bytes=vmem_limit),
            cost_estimate=cost,
        )

    try:
        out_padded = build(True)(x_c, a1_c, a2_c, b1_c, b2_c)
    except (TypeError, ValueError, NotImplementedError, pltpu.LoweringException):
        # pl.Buffered(1) single-buffering unsupported in this JAX build: retry
        # with default double buffering (identical semantics; the VMEM budget
        # above already assumes double buffering).  Genuine errors (shape
        # bugs / OOM) re-raise from the fallback build.
        out_padded = build(False)(x_c, a1_c, a2_c, b1_c, b2_c)

    return out_padded[:B, :output_width]


if __name__ == "__main__":
    key = jax.random.PRNGKey(0)
    list_a = (0.5, 0.5)
    list_b = (0.5, 0.5)
    bias_tune = 1.0

    def make_problem(k, B, in_w, var_w, out_w, dtype):
        kx, k1, k2, kb1, kb2 = jax.random.split(k, 5)
        x = jax.random.normal(kx, (B, in_w), jnp.float32).astype(dtype)
        A_1 = jax.random.normal(k1, (in_w, var_w), jnp.float32) * in_w ** (-list_b[0])
        A_2 = jax.random.normal(k2, (var_w, out_w), jnp.float32) * var_w ** (-list_b[1])
        b1 = jax.random.normal(kb1, (var_w,), jnp.float32)
        b2 = jax.random.normal(kb2, (out_w,), jnp.float32)
        return x, A_1, A_2, b1, b2

    def reference(x, A_1, A_2, b1, b2, act):
        """Module math with the kernel's bf16-MXU-input / f32-accumulate precision."""
        bf = lambda a: a.astype(jnp.bfloat16).astype(jnp.float32)
        s1 = float(x.shape[1]) ** (-list_a[0])
        s2 = float(A_1.shape[1]) ** (-list_a[1])
        hid = bf(x.astype(jnp.float32)) @ bf(A_1) * s1 + b1 * bias_tune
        if act == "relu":
            hid = jnp.maximum(hid, 0.0)
        elif act == "tanh":
            hid = jnp.tanh(hid)
        return bf(hid) @ bf(A_2) * s2 + b2 * bias_tune

    # --- check 1: small module-like shapes, trivial grid, f32 output path ---
    x, A_1, A_2, b1, b2 = make_problem(key, 8, 32, 64, 32, jnp.float32)
    out = abc_core_stack_forward(x, A_1, A_2, b1, b2, list_a=list_a,
                                 bias_tune=bias_tune, activation="relu")
    out = jax.block_until_ready(out)
    assert out.shape == (8, 32) and out.dtype == jnp.float32
    ref = reference(x, A_1, A_2, b1, b2, "relu")
    hid = jnp.maximum(x @ A_1 * 32 ** (-0.5) + b1, 0.0)
    ref_f32 = hid @ A_2 * 64 ** (-0.5) + b2
    assert jnp.allclose(out, ref, atol=5e-3, rtol=5e-3), \
        float(jnp.max(jnp.abs(out - ref)))
    assert jnp.allclose(out, ref_f32, atol=5e-2, rtol=5e-2), \
        float(jnp.max(jnp.abs(out - ref_f32)))

    # --- check 2: ragged shapes exercising batch / V / K tiling (grid 3x3x3),
    #     f32 output (accumulate-in-output path), tanh activation ---
    x2, A1b, A2b, b1b, b2b = make_problem(jax.random.PRNGKey(0),
                                          40, 300, 272, 72, jnp.float32)
    out2 = abc_core_stack_forward(x2, A1b, A2b, b1b, b2b, list_a=list_a,
                                  bias_tune=bias_tune, activation="tanh",
                                  batch_tile=16, v_tile=128, k_tile=128)
    out2 = jax.block_until_ready(out2)
    assert out2.shape == (40, 72) and out2.dtype == jnp.float32
    ref2 = reference(x2, A1b, A2b, b1b, b2b, "tanh")
    assert jnp.allclose(out2, ref2, atol=5e-3, rtol=5e-3), \
        float(jnp.max(jnp.abs(out2 - ref2)))

    # --- check 3: same tiled shapes with bf16 activations/output, exercising
    #     the f32 output-accumulator scratch path ---
    x3 = x2.astype(jnp.bfloat16)
    out3 = abc_core_stack_forward(x3, A1b, A2b, b1b, b2b, list_a=list_a,
                                  bias_tune=bias_tune, activation="tanh",
                                  batch_tile=16, v_tile=128, k_tile=128)
    out3 = jax.block_until_ready(out3)
    assert out3.shape == (40, 72) and out3.dtype == jnp.bfloat16
    ref3 = reference(x3, A1b, A2b, b1b, b2b, "tanh")
    assert jnp.allclose(out3.astype(jnp.float32), ref3, atol=5e-2, rtol=5e-2), \
        float(jnp.max(jnp.abs(out3.astype(jnp.float32) - ref3)))

    print("KERNEL_OK")
</pallas_src>

<mosaic_0001>
module attributes {stable_mosaic.version = 11 : i64} {
  func.func @_abc_kernel(%arg0: i32, %arg1: i32, %arg2: i32, %arg3: memref<16x128xbf16, #tpu.memory_space<vmem>>, %arg4: memref<128x128xbf16, #tpu.memory_space<vmem>>, %arg5: memref<128x128xbf16, #tpu.memory_space<vmem>>, %arg6: memref<1x128xf32, #tpu.memory_space<vmem>>, %arg7: memref<1x128xf32, #tpu.memory_space<vmem>>, %arg8: memref<16x128xf32, #tpu.memory_space<vmem>>) attributes {dimension_semantics = [#tpu.dimension_semantics<parallel>, #tpu.dimension_semantics<arbitrary>, #tpu.dimension_semantics<arbitrary>], iteration_bounds = array<i64: 1, 1, 1>, scalar_prefetch = 0 : i64, scratch_operands = 0 : i64, tpu.core_type = #tpu.core_type<tc>, window_params = [{pipeline_mode = #tpu.pipeline_mode<synchronous>, transform_indices = @transform_0, window_bounds = array<i64: 16, 128>}, {pipeline_mode = #tpu.pipeline_mode<synchronous>, transform_indices = @transform_1, window_bounds = array<i64: 128, 128>}, {pipeline_mode = #tpu.pipeline_mode<synchronous>, transform_indices = @transform_2, window_bounds = array<i64: 128, 128>}, {pipeline_mode = #tpu.pipeline_mode<synchronous>, transform_indices = @transform_3, window_bounds = array<i64: 1, 128>}, {pipeline_mode = #tpu.pipeline_mode<synchronous>, transform_indices = @transform_4, window_bounds = array<i64: 1, 128>}, {transform_indices = @transform_5, window_bounds = array<i64: 16, 128>}]} {
    %c0_i32 = arith.constant 0 : i32
    %0 = arith.cmpi eq, %arg1, %c0_i32 : i32
    %c0_i32_0 = arith.constant 0 : i32
    %1 = arith.cmpi eq, %arg2, %c0_i32_0 : i32
    %2 = arith.andi %0, %1 : i1
    %3 = arith.extui %2 : i1 to i32
    %c0_i32_1 = arith.constant 0 : i32
    %4 = arith.cmpi ne, %3, %c0_i32_1 : i32
    scf.if %4 {
      %cst_10 = arith.constant 0.000000e+00 : f32
      %16 = vector.broadcast %cst_10 : f32 to vector<16x128xf32>
      %c0_11 = arith.constant 0 : index
      %c0_12 = arith.constant 0 : index
      %17 = vector.load %arg8[%c0_11, %c0_12] : memref<16x128xf32, #tpu.memory_space<vmem>>, vector<16x128xf32>
      tpu.vector_store %arg8[%c0_11, %c0_12], %16 {strides = array<i32>} : memref<16x128xf32, #tpu.memory_space<vmem>>, vector<16x128xf32>,
    } else {
    }
    %c0 = arith.constant 0 : index
    %c0_2 = arith.constant 0 : index
    %5 = vector.load %arg3[%c0, %c0_2] : memref<16x128xbf16, #tpu.memory_space<vmem>>, vector<16x128xbf16>
    %c0_3 = arith.constant 0 : index
    %c0_4 = arith.constant 0 : index
    %6 = vector.load %arg4[%c0_3, %c0_4] : memref<128x128xbf16, #tpu.memory_space<vmem>>, vector<128x128xbf16>
    %cst = arith.constant dense<0.000000e+00> : vector<16x128xf32>
    %7 = tpu.matmul %5, %6, %cst {dimension_numbers = #tpu.dot_dimension_numbers<[1], [0], [0], [1], [0, 0, 1, 1], [], []>} : vector<16x128xbf16>, vector<128x128xbf16>, vector<16x128xf32> -> vector<16x128xf32>
    %c0_i32_5 = arith.constant 0 : i32
    %8 = arith.cmpi eq, %arg2, %c0_i32_5 : i32
    %9 = arith.extui %8 : i1 to i32
    %c0_i32_6 = arith.constant 0 : i32
    %10 = arith.cmpi ne, %9, %c0_i32_6 : i32
    scf.if %10 {
      %cst_10 = arith.constant 0.176776692 : f32
      %16 = vector.broadcast %cst_10 : f32 to vector<16x128xf32>
      %17 = arith.mulf %7, %16 : vector<16x128xf32>
      %c0_11 = arith.constant 0 : index
      %c0_12 = arith.constant 0 : index
      %18 = vector.load %arg6[%c0_11, %c0_12] : memref<1x128xf32, #tpu.memory_space<vmem>>, vector<1x128xf32>
      %cst_13 = arith.constant 1.000000e+00 : f32
      %19 = vector.broadcast %cst_13 : f32 to vector<1x128xf32>
      %20 = arith.mulf %18, %19 : vector<1x128xf32>
      %21 = vector.broadcast %20 : vector<1x128xf32> to vector<16x128xf32>
      %22 = arith.addf %17, %21 : vector<16x128xf32>
      %cst_14 = arith.constant 0.000000e+00 : f32
      %23 = vector.broadcast %cst_14 : f32 to vector<16x128xf32>
      %24 = arith.maximumf %22, %23 : vector<16x128xf32>
      %c0_15 = arith.constant 0 : index
      %c0_16 = arith.constant 0 : index
      %25 = vector.load %arg8[%c0_15, %c0_16] : memref<16x128xf32, #tpu.memory_space<vmem>>, vector<16x128xf32>
      %26 = arith.truncf %24 : vector<16x128xf32> to vector<16x128xbf16>
      %c0_17 = arith.constant 0 : index
      %c0_18 = arith.constant 0 : index
      %27 = vector.load %arg5[%c0_17, %c0_18] : memref<128x128xbf16, #tpu.memory_space<vmem>>, vector<128x128xbf16>
      %cst_19 = arith.constant dense<0.000000e+00> : vector<16x128xf32>
      %28 = tpu.matmul %26, %27, %cst_19 {dimension_numbers = #tpu.dot_dimension_numbers<[1], [0], [0], [1], [0, 0, 1, 1], [], []>} : vector<16x128xbf16>, vector<128x128xbf16>, vector<16x128xf32> -> vector<16x128xf32>
      %29 = arith.addf %25, %28 : vector<16x128xf32>
      %c0_20 = arith.constant 0 : index
      %c0_21 = arith.constant 0 : index
      %30 = vector.load %arg8[%c0_20, %c0_21] : memref<16x128xf32, #tpu.memory_space<vmem>>, vector<16x128xf32>
      tpu.vector_store %arg8[%c0_20, %c0_21], %29 {strides = array<i32>} : memref<16x128xf32, #tpu.memory_space<vmem>>, vector<16x128xf32>,
    } else {
    }
    %c0_i32_7 = arith.constant 0 : i32
    %11 = arith.cmpi eq, %arg1, %c0_i32_7 : i32
    %c0_i32_8 = arith.constant 0 : i32
    %12 = arith.cmpi eq, %arg2, %c0_i32_8 : i32
    %13 = arith.andi %11, %12 : i1
    %14 = arith.extui %13 : i1 to i32
    %c0_i32_9 = arith.constant 0 : i32
    %15 = arith.cmpi ne, %14, %c0_i32_9 : i32
    scf.if %15 {
      %c0_10 = arith.constant 0 : index
      %c0_11 = arith.constant 0 : index
      %16 = vector.load %arg8[%c0_10, %c0_11] : memref<16x128xf32, #tpu.memory_space<vmem>>, vector<16x128xf32>
      %cst_12 = arith.constant 1.250000e-01 : f32
      %17 = vector.broadcast %cst_12 : f32 to vector<16x128xf32>
      %18 = arith.mulf %16, %17 : vector<16x128xf32>
      %c0_13 = arith.constant 0 : index
      %c0_14 = arith.constant 0 : index
      %19 = vector.load %arg7[%c0_13, %c0_14] : memref<1x128xf32, #tpu.memory_space<vmem>>, vector<1x128xf32>
      %cst_15 = arith.constant 1.000000e+00 : f32
      %20 = vector.broadcast %cst_15 : f32 to vector<1x128xf32>
      %21 = arith.mulf %19, %20 : vector<1x128xf32>
      %22 = vector.broadcast %21 : vector<1x128xf32> to vector<16x128xf32>
      %23 = arith.addf %18, %22 : vector<16x128xf32>
      %c0_16 = arith.constant 0 : index
      %c0_17 = arith.constant 0 : index
      %24 = vector.load %arg8[%c0_16, %c0_17] : memref<16x128xf32, #tpu.memory_space<vmem>>, vector<16x128xf32>
      tpu.vector_store %arg8[%c0_16, %c0_17], %23 {strides = array<i32>} : memref<16x128xf32, #tpu.memory_space<vmem>>, vector<16x128xf32>,
    } else {
    }
    return
  }
  func.func @transform_0(%arg0: i32, %arg1: i32, %arg2: i32) -> (i32, i32) {
    %c0_i32 = arith.constant 0 : i32
    return %arg0, %arg2 : i32, i32
  }
  func.func @transform_1(%arg0: i32, %arg1: i32, %arg2: i32) -> (i32, i32) {
    %c0_i32 = arith.constant 0 : i32
    return %arg2, %arg1 : i32, i32
  }
  func.func @transform_2(%arg0: i32, %arg1: i32, %arg2: i32) -> (i32, i32) {
    %c0_i32 = arith.constant 0 : i32
    %c0_i32_0 = arith.constant 0 : i32
    return %arg1, %c0_i32 : i32, i32
  }
  func.func @transform_3(%arg0: i32, %arg1: i32, %arg2: i32) -> (i32, i32) {
    %c0_i32 = arith.constant 0 : i32
    %c0_i32_0 = arith.constant 0 : i32
    return %c0_i32, %arg1 : i32, i32
  }
  func.func @transform_4(%arg0: i32, %arg1: i32, %arg2: i32) -> (i32, i32) {
    %c0_i32 = arith.constant 0 : i32
    %c0_i32_0 = arith.constant 0 : i32
    %c0_i32_1 = arith.constant 0 : i32
    return %c0_i32, %c0_i32_0 : i32, i32
  }
  func.func @transform_5(%arg0: i32, %arg1: i32, %arg2: i32) -> (i32, i32) {
    %c0_i32 = arith.constant 0 : i32
    %c0_i32_0 = arith.constant 0 : i32
    return %arg0, %c0_i32 : i32, i32
  }
}

</mosaic_0001>

<llo_original>
// kernel: tpu_custom_call.1
$region0: #{tpu_custom_call.1}
  #allocation0 [shape = 'u32[]', space=smem, size = 0x4, offset = 0x4, fixed_abs, tag = 'smem constant byte address 0x4 - core index']
  #allocation1 [shape = 'u32[144,128]{1,0:T(1,128)}', space=vmem, size = 0x12000, scoped, tag = 'internal scratch']
  %s0 = inlined_call_operand.hbm [shape: bf16[16,128], index: 0, kind: input, shape index: {}]
  %s1 = inlined_call_operand.hbm [shape: bf16[128,128], index: 1, kind: input, shape index: {}]
  %s2 = inlined_call_operand.hbm [shape: bf16[128,128], index: 2, kind: input, shape index: {}]
  %s3 = inlined_call_operand.vmem [shape: f32[1,128], index: 3, kind: input, shape index: {}]
  %s4 = inlined_call_operand.vmem [shape: f32[1,128], index: 4, kind: input, shape index: {}]
  %s5 = inlined_call_operand.hbm [shape: f32[16,128], index: 5, kind: output, shape index: {}]
  %s6 = sld [smem:[#allocation0]]
  $region54: #{tpu_custom_call.1} parent=0
    _
  %s8 = ssub.s32 1, %s6
  %s9 = scalar_select 0, %s8, %s6
  $region1: #{tpu_custom_call.1} parent=0
    #allocation2 [shape = 'u8[4096]{0}', space=vmem, size = 0x1000, scoped, tag = 'input window, operand 0, single buffered']
    #allocation3 [shape = 's32[1]{0}', space=sflag, size = 0x4, scoped, tag = 'scoped memory for tpu_custom_call.1']
    #allocation4 [shape = 's32[1]{0}', space=sflag, size = 0x4, scoped, tag = 'scoped memory for tpu_custom_call.1']
    #allocation5 [shape = 'u8[32768]{0}', space=vmem, size = 0x8000, scoped, tag = 'input window, operand 1, single buffered']
    #allocation6 [shape = 's32[1]{0}', space=sflag, size = 0x4, scoped, tag = 'scoped memory for tpu_custom_call.1']
    #allocation7 [shape = 'u8[32768]{0}', space=vmem, size = 0x8000, scoped, tag = 'input window, operand 2, single buffered']
    #allocation8 [shape = 'u8[8192]{0}', space=vmem, size = 0x2000, scoped, tag = 'output window, operand 0, single buffered']
    %10 = vsyncpa [#allocation3], 0
    %11 = vsyncpa [#allocation6], 0
    %12 = vsyncpa [#allocation4], 0
    // Predicated region
    $region2: #{tpu_custom_call.1} parent=1 // pred_check
      _
    $region3: #{tpu_custom_call.1} parent=1 // pred_check_branch
      %14 = sbr.rel (0) target = $region5
    $region4: #{tpu_custom_call.1} parent=1 // pred_region
      %s16 = ssub.s32 128, 128
      %17 = vsyncadd [#allocation3], %s16
      %s18 = sshll.u32 [#allocation2], 4
      %s19 = int_to_ptr.vmem [resolvable:$true] %s18
      %24 = dma.hbm_to_vmem [thread:$0]  %s0, 128, %s19, [#allocation3], 64, 64, 4
    $region5: #{tpu_custom_call.1} parent=1 // pred_fallthru
      _
    // Predicated region
    $region6: #{tpu_custom_call.1} parent=1 // pred_check
      _
    $region7: #{tpu_custom_call.1} parent=1 // pred_check_branch
      %26 = sbr.rel (0) target = $region9
    $region8: #{tpu_custom_call.1} parent=1 // pred_region
      %s28 = ssub.s32 1024, 1024
      %29 = vsyncadd [#allocation6], %s28
      %s30 = sshll.u32 [#allocation5], 4
      %s31 = int_to_ptr.vmem [resolvable:$true] %s30
      %36 = dma.hbm_to_vmem [thread:$0]  %s1, 1024, %s31, [#allocation6], 64, 64, 4
    $region9: #{tpu_custom_call.1} parent=1 // pred_fallthru
      _
    // Predicated region
    $region10: #{tpu_custom_call.1} parent=1 // pred_check
      _
    $region11: #{tpu_custom_call.1} parent=1 // pred_check_branch
      %38 = sbr.rel (0) target = $region13
    $region12: #{tpu_custom_call.1} parent=1 // pred_region
      %s40 = ssub.s32 1024, 1024
      %41 = vsyncadd [#allocation6], %s40
      %s42 = sshll.u32 [#allocation7], 4
      %s43 = int_to_ptr.vmem [resolvable:$true] %s42
      %48 = dma.hbm_to_vmem [thread:$0]  %s2, 1024, %s43, [#allocation6], 64, 64, 4
    $region13: #{tpu_custom_call.1} parent=1 // pred_fallthru
      _
    // Predicated region
    $region14: #{tpu_custom_call.1} parent=1 // pred_check
      _
    $region15: #{tpu_custom_call.1} parent=1 // pred_check_branch
      %50 = sbr.rel (0) target = $region17
    $region16: #{tpu_custom_call.1} parent=1 // pred_region
      _
    $region17: #{tpu_custom_call.1} parent=1 // pred_fallthru
      _
    // Predicated region
    $region18: #{tpu_custom_call.1} parent=1 // pred_check
      _
    $region19: #{tpu_custom_call.1} parent=1 // pred_check_branch
      %52 = sbr.rel (0) target = $region21
    $region20: #{tpu_custom_call.1} parent=1 // pred_region
      _
    $region21: #{tpu_custom_call.1} parent=1 // pred_fallthru
      _
    // Predicated region
    $region22: #{tpu_custom_call.1} parent=1 // pred_check
      _
    $region23: #{tpu_custom_call.1} parent=1 // pred_check_branch
      %54 = sbr.rel (0) target = $region25
    $region24: #{tpu_custom_call.1} parent=1 // pred_region
      %55 = dma.done [#allocation3], 128
    $region25: #{tpu_custom_call.1} parent=1 // pred_fallthru
      _
    // Predicated region
    $region26: #{tpu_custom_call.1} parent=1 // pred_check
      _
    $region27: #{tpu_custom_call.1} parent=1 // pred_check_branch
      %57 = sbr.rel (0) target = $region29
    $region28: #{tpu_custom_call.1} parent=1 // pred_region
      %58 = dma.done [#allocation6], 1024
    $region29: #{tpu_custom_call.1} parent=1 // pred_fallthru
      _
    // Predicated region
    $region30: #{tpu_custom_call.1} parent=1 // pred_check
      _
    $region31: #{tpu_custom_call.1} parent=1 // pred_check_branch
      %60 = sbr.rel (0) target = $region33
    $region32: #{tpu_custom_call.1} parent=1 // pred_region
      %61 = dma.done [#allocation6], 1024
    $region33: #{tpu_custom_call.1} parent=1 // pred_fallthru
      _
    %p63 = scmp.eq.s32.totalorder 0, 0
    %p64 = scmp.eq.s32.totalorder 0, 0
    %p65 = pnand %p63, %p64
    %p66 = pneg %p65
    // Predicated region
    $region34: #{tpu_custom_call.1} parent=1 // pred_check
      _
    $region35: #{tpu_custom_call.1} parent=1 // pred_check_branch
      %68 = sbr.rel (%p65) target = $region37
    $region36: #{tpu_custom_call.1} parent=1 // pred_region
      %69 = vst [vmem:[#allocation8] sm:$0xff] 0.0
      %70 = vst [vmem:[#allocation8 + $0x8] sm:$0xff] 0.0
    $region37: #{tpu_custom_call.1} parent=1 // pred_fallthru
      _
    %v71 = vld [vmem:[#allocation2] sm:$0xf]
    %v72 = vld [vmem:[#allocation2 + $0x4] sm:$0xf]
    %v73 = vld [vmem:[#allocation5] sm:$0xf]
    %v74 = vld [vmem:[#allocation5 + $0x4] sm:$0xf]
    %v75 = vld [vmem:[#allocation5 + $0x8] sm:$0xf]
    %v76 = vld [vmem:[#allocation5 + $0xc] sm:$0xf]
    %v77 = vld [vmem:[#allocation5 + $0x10] sm:$0xf]
    %v78 = vld [vmem:[#allocation5 + $0x14] sm:$0xf]
    %v79 = vld [vmem:[#allocation5 + $0x18] sm:$0xf]
    %v80 = vld [vmem:[#allocation5 + $0x1c] sm:$0xf]
    %v81 = vld [vmem:[#allocation5 + $0x20] sm:$0xf]
    %v82 = vld [vmem:[#allocation5 + $0x24] sm:$0xf]
    %v83 = vld [vmem:[#allocation5 + $0x28] sm:$0xf]
    %v84 = vld [vmem:[#allocation5 + $0x2c] sm:$0xf]
    %v85 = vld [vmem:[#allocation5 + $0x30] sm:$0xf]
    %v86 = vld [vmem:[#allocation5 + $0x34] sm:$0xf]
    %v87 = vld [vmem:[#allocation5 + $0x38] sm:$0xf]
    %v88 = vld [vmem:[#allocation5 + $0x3c] sm:$0xf]
    %v91 = vunpack.c.l.b16 %v71
    %v92 = vunpack.c.l.b16 %v72
    %v93 = vpack.c.b16 %v92, %v91
    %v111 = vunpack.c.l.b16 %v73
    %v112 = vunpack.c.l.b16 %v74
    %v113 = vunpack.c.l.b16 %v75
    %v114 = vunpack.c.l.b16 %v76
    %v115 = vunpack.c.l.b16 %v77
    %v116 = vunpack.c.l.b16 %v78
    %v117 = vunpack.c.l.b16 %v79
    %v118 = vunpack.c.l.b16 %v80
    %v119 = vunpack.c.l.b16 %v81
    %v120 = vunpack.c.l.b16 %v82
    %v121 = vunpack.c.l.b16 %v83
    %v122 = vunpack.c.l.b16 %v84
    %v123 = vunpack.c.l.b16 %v85
    %v124 = vunpack.c.l.b16 %v86
    %v125 = vunpack.c.l.b16 %v87
    %v126 = vunpack.c.l.b16 %v88
    %v127 = vpack.c.b16 %v112, %v111
    %v128 = vpack.c.b16 %v114, %v113
    %v129 = vpack.c.b16 %v116, %v115
    %v130 = vpack.c.b16 %v118, %v117
    %v131 = vpack.c.b16 %v120, %v119
    %v132 = vpack.c.b16 %v122, %v121
    %v133 = vpack.c.b16 %v124, %v123
    %v134 = vpack.c.b16 %v126, %v125
    %143 = vmatprep.subr.bf16.mxu0 0
    %144 = vmatpush1.bf16.msra.mxu0 %v127
    %145 = vmatprep.subr.bf16.mxu0 0
    %146 = vmatpush1.bf16.msra.mxu0 %v128
    %147 = vmatprep.subr.bf16.mxu0 0
    %148 = vmatpush1.bf16.msra.mxu0 %v129
    %149 = vmatprep.subr.bf16.mxu0 0
    %150 = vmatpush1.bf16.msra.mxu0 %v130
    %151 = vmatprep.subr.bf16.mxu0 0
    %152 = vmatpush1.bf16.msra.mxu0 %v131
    %153 = vmatprep.subr.bf16.mxu0 0
    %154 = vmatpush1.bf16.msra.mxu0 %v132
    %155 = vmatprep.subr.bf16.mxu0 0
    %156 = vmatpush1.bf16.msra.mxu0 %v133
    %157 = vmatprep.subr.bf16.mxu0 0
    %158 = vmatpush1.bf16.msra.mxu0 %v134
    %159 = vmatprep.subr.bf16.mxu0 0
    %160 = vmatpush1.bf16.msra.mxu0 0
    %161 = vmatprep.subr.bf16.mxu0 0
    %162 = vmatpush1.bf16.msra.mxu0 0
    %163 = vmatprep.subr.bf16.mxu0 0
    %164 = vmatpush1.bf16.msra.mxu0 0
    %165 = vmatprep.subr.bf16.mxu0 0
    %166 = vmatpush1.bf16.msra.mxu0 0
    %167 = vmatprep.subr.bf16.mxu0 0
    %168 = vmatpush1.bf16.msra.mxu0 0
    %169 = vmatprep.subr.bf16.mxu0 0
    %170 = vmatpush1.bf16.msra.mxu0 0
    %171 = vmatprep.subr.bf16.mxu0 0
    %172 = vmatpush1.bf16.msra.mxu0 0
    %173 = vmatprep.subr.bf16.mxu0 0
    %174 = vmatpush1.bf16.msra.mxu0 0
    %175 = vmatprep.mubr.bf16.mxu0 0
    %176 = vmatmul.mubr.bf16.gmra.mrb[0].mxu0 %v93
    %v177 = vpop.f32.mrb[0].mxu0
    %v178 = vadd.f32 0.0, %v177
    %v179 = vpop.f32.mrb[0].mxu0
    %v180 = vpop.f32.mrb[0].mxu0
    %v181 = vadd.f32 0.0, %v180
    %v182 = vpop.f32.mrb[0].mxu0
    %183 = vdwg.mxu0
    // Predicated region
    $region38: #{tpu_custom_call.1} parent=1 // pred_check
      %p184 = pneg %p64
    $region39: #{tpu_custom_call.1} parent=1 // pred_check_branch
      %186 = sbr.rel (%p184) target = $region41
    $region40: #{tpu_custom_call.1} parent=1 // pred_region
      %v187 = vmul.f32 %v178, 0.17677669
      %v188 = vmul.f32 %v181, 0.17677669
      %v189 = vld [vmem:[%s3] sm:$0x1]
      %v191 = vlaneseq
      %v192 = vshrl.u32 %v191, 7
      %v193 = vsub.s32 0, %v192
      %v194 = vrot.slane %v189, %v193
      %v196 = vadd.f32 %v187, %v194
      %v197 = vadd.f32 %v188, %v194
      %v198 = vmax.f32 %v196, 0.0
      %v199 = vmax.f32 %v197, 0.0
      %v200 = vld [vmem:[#allocation8] sm:$0xff]
      %v201 = vld [vmem:[#allocation8 + $0x8] sm:$0xff]
      %v202 = vpack.c.bf16 %v199, %v198
      %v203 = vld [vmem:[#allocation7] sm:$0xf]
      %v204 = vld [vmem:[#allocation7 + $0x4] sm:$0xf]
      %v205 = vld [vmem:[#allocation7 + $0x8] sm:$0xf]
      %v206 = vld [vmem:[#allocation7 + $0xc] sm:$0xf]
      %v207 = vld [vmem:[#allocation7 + $0x10] sm:$0xf]
      %v208 = vld [vmem:[#allocation7 + $0x14] sm:$0xf]
      %v209 = vld [vmem:[#allocation7 + $0x18] sm:$0xf]
      %v210 = vld [vmem:[#allocation7 + $0x1c] sm:$0xf]
      %v211 = vld [vmem:[#allocation7 + $0x20] sm:$0xf]
      %v212 = vld [vmem:[#allocation7 + $0x24] sm:$0xf]
      %v213 = vld [vmem:[#allocation7 + $0x28] sm:$0xf]
      %v214 = vld [vmem:[#allocation7 + $0x2c] sm:$0xf]
      %v215 = vld [vmem:[#allocation7 + $0x30] sm:$0xf]
      %v216 = vld [vmem:[#allocation7 + $0x34] sm:$0xf]
      %v217 = vld [vmem:[#allocation7 + $0x38] sm:$0xf]
      %v218 = vld [vmem:[#allocation7 + $0x3c] sm:$0xf]
      %v235 = vunpack.c.l.b16 %v203
      %v236 = vunpack.c.l.b16 %v204
      %v237 = vunpack.c.l.b16 %v205
      %v238 = vunpack.c.l.b16 %v206
      %v239 = vunpack.c.l.b16 %v207
      %v240 = vunpack.c.l.b16 %v208
      %v241 = vunpack.c.l.b16 %v209
      %v242 = vunpack.c.l.b16 %v210
      %v243 = vunpack.c.l.b16 %v211
      %v244 = vunpack.c.l.b16 %v212
      %v245 = vunpack.c.l.b16 %v213
      %v246 = vunpack.c.l.b16 %v214
      %v247 = vunpack.c.l.b16 %v215
      %v248 = vunpack.c.l.b16 %v216
      %v249 = vunpack.c.l.b16 %v217
      %v250 = vunpack.c.l.b16 %v218
      %v251 = vpack.c.b16 %v236, %v235
      %v252 = vpack.c.b16 %v238, %v237
      %v253 = vpack.c.b16 %v240, %v239
      %v254 = vpack.c.b16 %v242, %v241
      %v255 = vpack.c.b16 %v244, %v243
      %v256 = vpack.c.b16 %v246, %v245
      %v257 = vpack.c.b16 %v248, %v247
      %v258 = vpack.c.b16 %v250, %v249
      %267 = vmatprep.subr.bf16.mxu0 0
      %268 = vmatpush1.bf16.msra.mxu0 %v251
      %269 = vmatprep.subr.bf16.mxu0 0
      %270 = vmatpush1.bf16.msra.mxu0 %v252
      %271 = vmatprep.subr.bf16.mxu0 0
      %272 = vmatpush1.bf16.msra.mxu0 %v253
      %273 = vmatprep.subr.bf16.mxu0 0
      %274 = vmatpush1.bf16.msra.mxu0 %v254
      %275 = vmatprep.subr.bf16.mxu0 0
      %276 = vmatpush1.bf16.msra.mxu0 %v255
      %277 = vmatprep.subr.bf16.mxu0 0
      %278 = vmatpush1.bf16.msra.mxu0 %v256
      %279 = vmatprep.subr.bf16.mxu0 0
      %280 = vmatpush1.bf16.msra.mxu0 %v257
      %281 = vmatprep.subr.bf16.mxu0 0
      %282 = vmatpush1.bf16.msra.mxu0 %v258
      %283 = vmatprep.subr.bf16.mxu0 0
      %284 = vmatpush1.bf16.msra.mxu0 0
      %285 = vmatprep.subr.bf16.mxu0 0
      %286 = vmatpush1.bf16.msra.mxu0 0
      %287 = vmatprep.subr.bf16.mxu0 0
      %288 = vmatpush1.bf16.msra.mxu0 0
      %289 = vmatprep.subr.bf16.mxu0 0
      %290 = vmatpush1.bf16.msra.mxu0 0
      %291 = vmatprep.subr.bf16.mxu0 0
      %292 = vmatpush1.bf16.msra.mxu0 0
      %293 = vmatprep.subr.bf16.mxu0 0
      %294 = vmatpush1.bf16.msra.mxu0 0
      %295 = vmatprep.subr.bf16.mxu0 0
      %296 = vmatpush1.bf16.msra.mxu0 0
      %297 = vmatprep.subr.bf16.mxu0 0
      %298 = vmatpush1.bf16.msra.mxu0 0
      %299 = vmatprep.mubr.bf16.mxu0 0
      %300 = vmatmul.mubr.bf16.gmra.mrb[0].mxu0 %v202
      %v301 = vpop.f32.mrb[0].mxu0
      %v302 = vadd.f32 0.0, %v301
      %v303 = vpop.f32.mrb[0].mxu0
      %v304 = vpop.f32.mrb[0].mxu0
      %v305 = vadd.f32 0.0, %v304
      %v306 = vpop.f32.mrb[0].mxu0
      %307 = vdwg.mxu0
      %v308 = vadd.f32 %v200, %v302
      %v309 = vadd.f32 %v201, %v305
      %310 = vst [vmem:[#allocation8] sm:$0xff] %v308
      %311 = vst [vmem:[#allocation8 + $0x8] sm:$0xff] %v309
    $region41: #{tpu_custom_call.1} parent=1 // pred_fallthru
      _
    // Predicated region
    $region42: #{tpu_custom_call.1} parent=1 // pred_check
      _
    $region43: #{tpu_custom_call.1} parent=1 // pred_check_branch
      %313 = sbr.rel (%p65) target = $region45
    $region44: #{tpu_custom_call.1} parent=1 // pred_region
      %v314 = vld [vmem:[#allocation8] sm:$0xff]
      %v315 = vld [vmem:[#allocation8 + $0x8] sm:$0xff]
      %v316 = vmul.f32 %v314, 0.125
      %v317 = vmul.f32 %v315, 0.125
      %v318 = vld [vmem:[%s4] sm:$0x1]
      %v320 = vlaneseq
      %v321 = vshrl.u32 %v320, 7
      %v322 = vsub.s32 0, %v321
      %v323 = vrot.slane %v318, %v322
      %v325 = vadd.f32 %v316, %v323
      %v326 = vadd.f32 %v317, %v323
      %327 = vst [vmem:[#allocation8] sm:$0xff] %v325
      %328 = vst [vmem:[#allocation8 + $0x8] sm:$0xff] %v326
    $region45: #{tpu_custom_call.1} parent=1 // pred_fallthru
      _
    // Predicated region
    $region46: #{tpu_custom_call.1} parent=1 // pred_check
      _
    $region47: #{tpu_custom_call.1} parent=1 // pred_check_branch
      %330 = sbr.rel (0) target = $region49
    $region48: #{tpu_custom_call.1} parent=1 // pred_region
      %s332 = ssub.s32 256, 256
      %333 = vsyncadd [#allocation4], %s332
      %s334 = sshll.u32 [#allocation8], 4
      %s335 = int_to_ptr.vmem [resolvable:$true] %s334
      %340 = dma.vmem_to_hbm [thread:$0]  %s335, 256, %s5, [#allocation4], 128, 128, 8
    $region49: #{tpu_custom_call.1} parent=1 // pred_fallthru
      _
    // Predicated region
    $region50: #{tpu_custom_call.1} parent=1 // pred_check
      _
    $region51: #{tpu_custom_call.1} parent=1 // pred_check_branch
      %342 = sbr.rel (0) target = $region53
    $region52: #{tpu_custom_call.1} parent=1 // pred_region
      %343 = dma.done [#allocation4], 256
    $region53: #{tpu_custom_call.1} parent=1 // pred_fallthru
      _
    %344 = vsyncpa [#allocation3], 1
    %345 = vsyncpa [#allocation6], 1
    %346 = vsyncpa [#allocation4], 1

</llo_original>
